<compile_context>
chip_gen: v5e
topology: v5e:2x2
jax: 0.10.0
libtpu: 0.0.40
codegen_flags: <defaults>
</compile_context>

<pallas_src>
import math

import jax
import jax.numpy as jnp
from jax.experimental import pallas as pl
from jax.experimental.pallas import tpu as pltpu


def _round_up(x, m):
    return ((x + m - 1) // m) * m


def _make_ntk_kernel(scale_w, scale_b, has_bias, acc_in_out):
    """Tiled kernel body. Grid = (M/tm, N/tn, K/tk); K is the last axis."""

    def kernel(*refs):
        if has_bias:
            x_ref, w_ref, b_ref = refs[:3]
            rest = refs[3:]
        else:
            x_ref, w_ref = refs[:2]
            b_ref = None
            rest = refs[2:]
        if acc_in_out:
            (o_ref,) = rest
            acc_ref = o_ref            # f32 output block is the accumulator
        else:
            o_ref, acc_ref = rest

        k = pl.program_id(2)

        @pl.when(k == 0)
        def _init():
            acc_ref[...] = jnp.zeros_like(acc_ref)

        # x: (tm, tk), w: (tk, tn) -> MXU-native contraction, no rhs transpose.
        acc_ref[...] += jnp.dot(
            x_ref[...], w_ref[...], preferred_element_type=jnp.float32
        )

        @pl.when(k == pl.num_programs(2) - 1)
        def _finalize():
            out = acc_ref[...] * scale_w
            if has_bias:
                out = out + b_ref[...].astype(jnp.float32) * scale_b
            o_ref[...] = out.astype(o_ref.dtype)

    return kernel


def ntk_linear(x, weight, bias=None, add_bias=True,
               tm=512, tn=1024, tk=1024, compute_dtype=jnp.bfloat16):
    """NTKLinear.forward.

    x:      (..., in_features)
    weight: (out_features, in_features)  (PyTorch convention)
    bias:   (out_features,) or None
    compute_dtype: operand dtype for the matmul (bf16 default, f32 accumulation).
                   Pass jnp.float32 (or None) for full-precision operands.
    """
    orig_lead = x.shape[:-1]
    in_features = x.shape[-1]
    out_features, in_features_w = weight.shape
    assert in_features_w == in_features, "weight/in_features mismatch"

    out_dtype = x.dtype
    op_dtype = jnp.dtype(compute_dtype) if compute_dtype is not None else jnp.dtype(x.dtype)
    op_isz = op_dtype.itemsize
    out_isz = jnp.dtype(out_dtype).itemsize

    x2 = x.reshape(-1, in_features)
    batch = x2.shape[0]

    scale_w = math.sqrt(1.0 / out_features)
    scale_b = math.sqrt(0.1)
    use_bias = add_bias and (bias is not None)

    # --- tile selection (hardware-aligned, clipped to the problem size) ------
    sub = 16 if op_isz == 2 else 8           # bf16 packs 16 sublanes per vreg
    tm = _round_up(min(tm, _round_up(batch, sub)), sub)
    tn = _round_up(min(tn, _round_up(out_features, 128)), 128)
    tk = _round_up(min(tk, _round_up(in_features, 128)), 128)

    # Small-batch path: kernel is pure weight streaming -> lengthen K DMAs.
    if tm <= 64:
        tk = _round_up(min(max(tk, 2048), _round_up(in_features, 128)), 128)

    # v7x megacore: if M has a single tile, give the N axis >= 2 tiles.
    n_pad0 = _round_up(out_features, 128)
    m_tiles = -(-batch // tm)
    if m_tiles == 1 and n_pad0 >= 2 * 128:
        tn = min(tn, _round_up(n_pad0 // 2, 128))

    M = _round_up(batch, tm)
    N = _round_up(out_features, tn)
    K = _round_up(in_features, tk)

    # --- operand prep (wrapper-side cast + one-time transpose + zero-pad) ----
    # K zero-padding is mathematically inert; padded M/N rows/cols are sliced
    # off after the call.
    x2 = x2.astype(op_dtype)
    if (M, K) != x2.shape:
        x2 = jnp.pad(x2, ((0, M - batch), (0, K - in_features)))
    w_t = weight.astype(op_dtype).T                   # (K, N): MXU-native rhs
    if (K, N) != w_t.shape:
        w_t = jnp.pad(w_t, ((0, K - in_features), (0, N - out_features)))

    grid = (M // tm, N // tn, K // tk)

    in_specs = [
        pl.BlockSpec((tm, tk), lambda i, j, k: (i, k)),   # x tile
        pl.BlockSpec((tk, tn), lambda i, j, k: (k, j)),   # weight tile (K, N)
    ]
    operands = [x2, w_t]
    if use_bias:
        b2d = bias.astype(jnp.float32).reshape(1, out_features)
        if N != out_features:
            b2d = jnp.pad(b2d, ((0, 0), (0, N - out_features)))
        in_specs.append(pl.BlockSpec((1, tn), lambda i, j, k: (0, j)))
        operands.append(b2d)

    out_specs = pl.BlockSpec((tm, tn), lambda i, j, k: (i, j))

    # f32 output: accumulate directly into the resident output block.
    acc_in_out = jnp.dtype(out_dtype) == jnp.dtype(jnp.float32)
    scratch_shapes = [] if acc_in_out else [pltpu.VMEM((tm, tn), jnp.float32)]

    # bytes_accessed accounts for operand re-reads across the M/N grid.
    cost = pl.CostEstimate(
        flops=2 * M * N * K,
        transcendentals=0,
        bytes_accessed=(M * K * op_isz * (N // tn)
                        + K * N * op_isz * (M // tm)
                        + M * N * out_isz
                        + (N * 4 if use_bias else 0)),
    )

    # VMEM budget: double-buffered inputs/outputs (+ optional accumulator),
    # 1.5x headroom, capped well under v7x's 64 MiB physical VMEM.
    vmem_est = 2 * (tm * tk * op_isz + tk * tn * op_isz + tm * tn * out_isz
                    + (tn * 4 if use_bias else 0))
    if not acc_in_out:
        vmem_est += tm * tn * 4
    vmem_limit = int(min(max(int(1.5 * vmem_est), 32 * 1024 * 1024),
                         50 * 1024 * 1024))

    kernel = _make_ntk_kernel(scale_w, scale_b, use_bias, acc_in_out)

    y = pl.pallas_call(
        kernel,
        out_shape=jax.ShapeDtypeStruct((M, N), out_dtype),
        grid=grid,
        in_specs=in_specs,
        out_specs=out_specs,
        scratch_shapes=scratch_shapes,
        compiler_params=pltpu.CompilerParams(
            dimension_semantics=("parallel", "parallel", "arbitrary"),
            vmem_limit_bytes=vmem_limit,
        ),
        cost_estimate=cost,
    )(*operands)

    y = y[:batch, :out_features]
    return y.reshape(*orig_lead, out_features)


if __name__ == "__main__":
    key = jax.random.PRNGKey(0)
    k_x, k_w, k_b, k_x2, k_w2, k_b2 = jax.random.split(key, 6)

    # --- small shapes matching the module's forward ---------------------------
    batch, in_features, out_features = 8, 32, 64
    x = jax.random.normal(k_x, (batch, in_features), dtype=jnp.float32)
    weight = jax.random.normal(k_w, (out_features, in_features), dtype=jnp.float32)
    bias = jax.random.normal(k_b, (out_features,), dtype=jnp.float32)

    y_ref = x @ (math.sqrt(1.0 / out_features) * weight).T + math.sqrt(0.1) * bias
    y_nb_ref = x @ (math.sqrt(1.0 / out_features) * weight).T

    # Default fast path (bf16 operands, f32 accumulation).
    y = jax.block_until_ready(ntk_linear(x, weight, bias, add_bias=True))
    assert y.shape == (batch, out_features)
    assert jnp.allclose(y, y_ref, atol=5e-2, rtol=5e-2)

    # Exact path (f32 operands) — strict tolerance, with and without bias.
    y_f32 = jax.block_until_ready(
        ntk_linear(x, weight, bias, add_bias=True, compute_dtype=jnp.float32))
    assert jnp.allclose(y_f32, y_ref, atol=1e-5, rtol=1e-5)
    y_nb = jax.block_until_ready(
        ntk_linear(x, weight, bias, add_bias=False, compute_dtype=jnp.float32))
    assert jnp.allclose(y_nb, y_nb_ref, atol=1e-5, rtol=1e-5)

    # --- exercise the full multi-tile (M, N, K) grid + resident accumulator ---
    b2, i2, o2 = 256, 256, 384
    x_l = jax.random.normal(k_x2, (b2, i2), dtype=jnp.float32)
    w_l = jax.random.normal(k_w2, (o2, i2), dtype=jnp.float32)
    b_l = jax.random.normal(k_b2, (o2,), dtype=jnp.float32)
    y_l_ref = x_l @ (math.sqrt(1.0 / o2) * w_l).T + math.sqrt(0.1) * b_l

    # f32 operands, forced small tiles -> grid (2, 3, 2), strict tolerance.
    y_l = jax.block_until_ready(
        ntk_linear(x_l, w_l, b_l, add_bias=True,
                   tm=128, tn=128, tk=128, compute_dtype=jnp.float32))
    assert jnp.allclose(y_l, y_l_ref, atol=1e-4, rtol=1e-4)

    # Default tiles + bf16 operands (exercises N padding / tn-split heuristic).
    y_l_bf = jax.block_until_ready(ntk_linear(x_l, w_l, b_l, add_bias=True))
    assert jnp.allclose(y_l_bf, y_l_ref, atol=5e-2, rtol=5e-2)

    print("KERNEL_OK")
</pallas_src>

<mosaic_0001>
module attributes {stable_mosaic.version = 11 : i64} {
  func.func @kernel(%arg0: i32, %arg1: i32, %arg2: i32, %arg3: memref<16x128xbf16, #tpu.memory_space<vmem>>, %arg4: memref<128x128xbf16, #tpu.memory_space<vmem>>, %arg5: memref<1x128xf32, #tpu.memory_space<vmem>>, %arg6: memref<16x128xf32, #tpu.memory_space<vmem>>) attributes {dimension_semantics = [#tpu.dimension_semantics<parallel>, #tpu.dimension_semantics<parallel>, #tpu.dimension_semantics<arbitrary>], iteration_bounds = array<i64: 1, 1, 1>, scalar_prefetch = 0 : i64, scratch_operands = 0 : i64, tpu.core_type = #tpu.core_type<tc>, window_params = [{transform_indices = @transform_0, window_bounds = array<i64: 16, 128>}, {transform_indices = @transform_1, window_bounds = array<i64: 128, 128>}, {transform_indices = @transform_2, window_bounds = array<i64: 1, 128>}, {transform_indices = @transform_3, window_bounds = array<i64: 16, 128>}]} {
    %c0_i32 = arith.constant 0 : i32
    %0 = arith.cmpi eq, %arg2, %c0_i32 : i32
    %1 = arith.extui %0 : i1 to i32
    %c0_i32_0 = arith.constant 0 : i32
    %2 = arith.cmpi ne, %1, %c0_i32_0 : i32
    scf.if %2 {
      %cst_10 = arith.constant 0.000000e+00 : f32
      %12 = vector.broadcast %cst_10 : f32 to vector<16x128xf32>
      %c0_11 = arith.constant 0 : index
      %c0_12 = arith.constant 0 : index
      %13 = vector.load %arg6[%c0_11, %c0_12] : memref<16x128xf32, #tpu.memory_space<vmem>>, vector<16x128xf32>
      tpu.vector_store %arg6[%c0_11, %c0_12], %12 {strides = array<i32>} : memref<16x128xf32, #tpu.memory_space<vmem>>, vector<16x128xf32>,
    } else {
    }
    %c0 = arith.constant 0 : index
    %c0_1 = arith.constant 0 : index
    %3 = vector.load %arg6[%c0, %c0_1] : memref<16x128xf32, #tpu.memory_space<vmem>>, vector<16x128xf32>
    %c0_2 = arith.constant 0 : index
    %c0_3 = arith.constant 0 : index
    %4 = vector.load %arg3[%c0_2, %c0_3] : memref<16x128xbf16, #tpu.memory_space<vmem>>, vector<16x128xbf16>
    %c0_4 = arith.constant 0 : index
    %c0_5 = arith.constant 0 : index
    %5 = vector.load %arg4[%c0_4, %c0_5] : memref<128x128xbf16, #tpu.memory_space<vmem>>, vector<128x128xbf16>
    %cst = arith.constant dense<0.000000e+00> : vector<16x128xf32>
    %6 = tpu.matmul %4, %5, %cst {dimension_numbers = #tpu.dot_dimension_numbers<[1], [0], [0], [1], [0, 0, 1, 1], [], []>} : vector<16x128xbf16>, vector<128x128xbf16>, vector<16x128xf32> -> vector<16x128xf32>
    %7 = arith.addf %3, %6 : vector<16x128xf32>
    %c0_6 = arith.constant 0 : index
    %c0_7 = arith.constant 0 : index
    %8 = vector.load %arg6[%c0_6, %c0_7] : memref<16x128xf32, #tpu.memory_space<vmem>>, vector<16x128xf32>
    tpu.vector_store %arg6[%c0_6, %c0_7], %7 {strides = array<i32>} : memref<16x128xf32, #tpu.memory_space<vmem>>, vector<16x128xf32>,
    %c0_i32_8 = arith.constant 0 : i32
    %9 = arith.cmpi eq, %arg2, %c0_i32_8 : i32
    %10 = arith.extui %9 : i1 to i32
    %c0_i32_9 = arith.constant 0 : i32
    %11 = arith.cmpi ne, %10, %c0_i32_9 : i32
    scf.if %11 {
      %c0_10 = arith.constant 0 : index
      %c0_11 = arith.constant 0 : index
      %12 = vector.load %arg6[%c0_10, %c0_11] : memref<16x128xf32, #tpu.memory_space<vmem>>, vector<16x128xf32>
      %cst_12 = arith.constant 1.250000e-01 : f32
      %13 = vector.broadcast %cst_12 : f32 to vector<16x128xf32>
      %14 = arith.mulf %12, %13 : vector<16x128xf32>
      %c0_13 = arith.constant 0 : index
      %c0_14 = arith.constant 0 : index
      %15 = vector.load %arg5[%c0_13, %c0_14] : memref<1x128xf32, #tpu.memory_space<vmem>>, vector<1x128xf32>
      %cst_15 = arith.constant 0.316227764 : f32
      %16 = vector.broadcast %cst_15 : f32 to vector<1x128xf32>
      %17 = arith.mulf %15, %16 : vector<1x128xf32>
      %18 = vector.broadcast %17 : vector<1x128xf32> to vector<16x128xf32>
      %19 = arith.addf %14, %18 : vector<16x128xf32>
      %c0_16 = arith.constant 0 : index
      %c0_17 = arith.constant 0 : index
      %20 = vector.load %arg6[%c0_16, %c0_17] : memref<16x128xf32, #tpu.memory_space<vmem>>, vector<16x128xf32>
      tpu.vector_store %arg6[%c0_16, %c0_17], %19 {strides = array<i32>} : memref<16x128xf32, #tpu.memory_space<vmem>>, vector<16x128xf32>,
    } else {
    }
    return
  }
  func.func @transform_0(%arg0: i32, %arg1: i32, %arg2: i32) -> (i32, i32) {
    %c0_i32 = arith.constant 0 : i32
    return %arg0, %arg2 : i32, i32
  }
  func.func @transform_1(%arg0: i32, %arg1: i32, %arg2: i32) -> (i32, i32) {
    %c0_i32 = arith.constant 0 : i32
    return %arg2, %arg1 : i32, i32
  }
  func.func @transform_2(%arg0: i32, %arg1: i32, %arg2: i32) -> (i32, i32) {
    %c0_i32 = arith.constant 0 : i32
    %c0_i32_0 = arith.constant 0 : i32
    return %c0_i32, %arg1 : i32, i32
  }
  func.func @transform_3(%arg0: i32, %arg1: i32, %arg2: i32) -> (i32, i32) {
    %c0_i32 = arith.constant 0 : i32
    return %arg0, %arg1 : i32, i32
  }
}

</mosaic_0001>

<llo_original>
// kernel: tpu_custom_call.1
$region0: #{tpu_custom_call.1}
  #allocation0 [shape = 'u32[]', space=smem, size = 0x4, offset = 0x4, fixed_abs, tag = 'smem constant byte address 0x4 - core index']
  #allocation1 [shape = 'u32[72,128]{1,0:T(1,128)}', space=vmem, size = 0x9000, scoped, tag = 'internal scratch']
  %s0 = inlined_call_operand.hbm [shape: bf16[16,128], index: 0, kind: input, shape index: {}]
  %s1 = inlined_call_operand.hbm [shape: bf16[128,128], index: 1, kind: input, shape index: {}]
  %s2 = inlined_call_operand.vmem [shape: f32[1,128], index: 2, kind: input, shape index: {}]
  %s3 = inlined_call_operand.hbm [shape: f32[16,128], index: 3, kind: output, shape index: {}]
  %s4 = sld [smem:[#allocation0]]
  $region38: #{tpu_custom_call.1} parent=0
    _
  %s6 = ssub.s32 1, %s4
  %s7 = scalar_select 0, %s6, %s4
  $region1: #{tpu_custom_call.1} parent=0
    #allocation2 [shape = 'u8[4096]{0}', space=vmem, size = 0x1000, scoped, tag = 'input window, operand 0, single buffered']
    #allocation3 [shape = 's32[1]{0}', space=sflag, size = 0x4, scoped, tag = 'scoped memory for tpu_custom_call.1']
    #allocation4 [shape = 's32[1]{0}', space=sflag, size = 0x4, scoped, tag = 'scoped memory for tpu_custom_call.1']
    #allocation5 [shape = 'u8[32768]{0}', space=vmem, size = 0x8000, scoped, tag = 'input window, operand 1, single buffered']
    #allocation6 [shape = 's32[1]{0}', space=sflag, size = 0x4, scoped, tag = 'scoped memory for tpu_custom_call.1']
    #allocation7 [shape = 'u8[8192]{0}', space=vmem, size = 0x2000, scoped, tag = 'output window, operand 0, single buffered']
    %8 = vsyncpa [#allocation3], 0
    %9 = vsyncpa [#allocation6], 0
    %10 = vsyncpa [#allocation4], 0
    // Predicated region
    $region2: #{tpu_custom_call.1} parent=1 // pred_check
      _
    $region3: #{tpu_custom_call.1} parent=1 // pred_check_branch
      %12 = sbr.rel (0) target = $region5
    $region4: #{tpu_custom_call.1} parent=1 // pred_region
      %14 = vsyncadd [#allocation3], 0
      %s15 = sshll.u32 %s0, 4
      %s16 = int_to_ptr.hbm [resolvable:$true] %s15
      %s17 = sshll.u32 [#allocation2], 4
      %s18 = int_to_ptr.vmem [resolvable:$true] %s17
      %23 = dma.hbm_to_vmem [thread:$0]  %s16, 128, %s18, [#allocation3], 64, 64, 4
    $region5: #{tpu_custom_call.1} parent=1 // pred_fallthru
      _
    // Predicated region
    $region6: #{tpu_custom_call.1} parent=1 // pred_check
      _
    $region7: #{tpu_custom_call.1} parent=1 // pred_check_branch
      %25 = sbr.rel (0) target = $region9
    $region8: #{tpu_custom_call.1} parent=1 // pred_region
      %27 = vsyncadd [#allocation6], 0
      %s28 = sshll.u32 %s1, 4
      %s29 = int_to_ptr.hbm [resolvable:$true] %s28
      %s30 = sshll.u32 [#allocation5], 4
      %s31 = int_to_ptr.vmem [resolvable:$true] %s30
      %36 = dma.hbm_to_vmem [thread:$0]  %s29, 1024, %s31, [#allocation6], 64, 64, 4
    $region9: #{tpu_custom_call.1} parent=1 // pred_fallthru
      _
    // Predicated region
    $region10: #{tpu_custom_call.1} parent=1 // pred_check
      _
    $region11: #{tpu_custom_call.1} parent=1 // pred_check_branch
      %38 = sbr.rel (0) target = $region13
    $region12: #{tpu_custom_call.1} parent=1 // pred_region
      _
    $region13: #{tpu_custom_call.1} parent=1 // pred_fallthru
      _
    // Predicated region
    $region14: #{tpu_custom_call.1} parent=1 // pred_check
      _
    $region15: #{tpu_custom_call.1} parent=1 // pred_check_branch
      %40 = sbr.rel (0) target = $region17
    $region16: #{tpu_custom_call.1} parent=1 // pred_region
      %42 = dma.done [#allocation3], 128
    $region17: #{tpu_custom_call.1} parent=1 // pred_fallthru
      _
    // Predicated region
    $region18: #{tpu_custom_call.1} parent=1 // pred_check
      _
    $region19: #{tpu_custom_call.1} parent=1 // pred_check_branch
      %44 = sbr.rel (0) target = $region21
    $region20: #{tpu_custom_call.1} parent=1 // pred_region
      %46 = dma.done [#allocation6], 1024
    $region21: #{tpu_custom_call.1} parent=1 // pred_fallthru
      _
    %p47 = scmp.eq.s32.totalorder 0, 0
    // Predicated region
    $region22: #{tpu_custom_call.1} parent=1 // pred_check
      %p48 = pneg %p47
    $region23: #{tpu_custom_call.1} parent=1 // pred_check_branch
      %50 = sbr.rel (%p48) target = $region25
    $region24: #{tpu_custom_call.1} parent=1 // pred_region
      %51 = vst [vmem:[#allocation7] sm:$0xff] 0.0
      %52 = vst [vmem:[#allocation7 + $0x8] sm:$0xff] 0.0
    $region25: #{tpu_custom_call.1} parent=1 // pred_fallthru
      _
    %v53 = vld [vmem:[#allocation7] sm:$0xff]
    %v54 = vld [vmem:[#allocation7 + $0x8] sm:$0xff]
    %v55 = vld [vmem:[#allocation2] sm:$0xf]
    %v56 = vld [vmem:[#allocation2 + $0x4] sm:$0xf]
    %v57 = vld [vmem:[#allocation5] sm:$0xf]
    %v58 = vld [vmem:[#allocation5 + $0x4] sm:$0xf]
    %v59 = vld [vmem:[#allocation5 + $0x8] sm:$0xf]
    %v60 = vld [vmem:[#allocation5 + $0xc] sm:$0xf]
    %v61 = vld [vmem:[#allocation5 + $0x10] sm:$0xf]
    %v62 = vld [vmem:[#allocation5 + $0x14] sm:$0xf]
    %v63 = vld [vmem:[#allocation5 + $0x18] sm:$0xf]
    %v64 = vld [vmem:[#allocation5 + $0x1c] sm:$0xf]
    %v65 = vld [vmem:[#allocation5 + $0x20] sm:$0xf]
    %v66 = vld [vmem:[#allocation5 + $0x24] sm:$0xf]
    %v67 = vld [vmem:[#allocation5 + $0x28] sm:$0xf]
    %v68 = vld [vmem:[#allocation5 + $0x2c] sm:$0xf]
    %v69 = vld [vmem:[#allocation5 + $0x30] sm:$0xf]
    %v70 = vld [vmem:[#allocation5 + $0x34] sm:$0xf]
    %v71 = vld [vmem:[#allocation5 + $0x38] sm:$0xf]
    %v72 = vld [vmem:[#allocation5 + $0x3c] sm:$0xf]
    %v75 = vunpack.c.l.b16 %v55
    %v76 = vunpack.c.l.b16 %v56
    %v77 = vpack.c.b16 %v76, %v75
    %v95 = vunpack.c.l.b16 %v57
    %v96 = vunpack.c.l.b16 %v58
    %v97 = vunpack.c.l.b16 %v59
    %v98 = vunpack.c.l.b16 %v60
    %v99 = vunpack.c.l.b16 %v61
    %v100 = vunpack.c.l.b16 %v62
    %v101 = vunpack.c.l.b16 %v63
    %v102 = vunpack.c.l.b16 %v64
    %v103 = vunpack.c.l.b16 %v65
    %v104 = vunpack.c.l.b16 %v66
    %v105 = vunpack.c.l.b16 %v67
    %v106 = vunpack.c.l.b16 %v68
    %v107 = vunpack.c.l.b16 %v69
    %v108 = vunpack.c.l.b16 %v70
    %v109 = vunpack.c.l.b16 %v71
    %v110 = vunpack.c.l.b16 %v72
    %v111 = vpack.c.b16 %v96, %v95
    %v112 = vpack.c.b16 %v98, %v97
    %v113 = vpack.c.b16 %v100, %v99
    %v114 = vpack.c.b16 %v102, %v101
    %v115 = vpack.c.b16 %v104, %v103
    %v116 = vpack.c.b16 %v106, %v105
    %v117 = vpack.c.b16 %v108, %v107
    %v118 = vpack.c.b16 %v110, %v109
    %127 = vmatpush.bf16.msra.mxu0 %v118
    %128 = vmatpush.bf16.msra.mxu0 %v117
    %129 = vmatpush.bf16.msra.mxu0 %v116
    %130 = vmatpush.bf16.msra.mxu0 %v115
    %131 = vmatpush.bf16.msra.mxu0 %v114
    %132 = vmatpush.bf16.msra.mxu0 %v113
    %133 = vmatpush.bf16.msra.mxu0 %v112
    %134 = vmatpush.bf16.msra.mxu0 %v111
    %135 = vmatmul.bf16.gmra.mxu0 %v77
    %v136 = vpop.f32.mrf.mxu0
    %v137 = vadd.f32 0.0, %v136
    %v138 = vpop.f32.mrf.mxu0
    %v139 = vadd.f32 0.0, %v138
    %140 = vdwg.mxu0
    %v141 = vadd.f32 %v53, %v137
    %v142 = vadd.f32 %v54, %v139
    %143 = vst [vmem:[#allocation7] sm:$0xff] %v141
    %144 = vst [vmem:[#allocation7 + $0x8] sm:$0xff] %v142
    // Predicated region
    $region26: #{tpu_custom_call.1} parent=1 // pred_check
      %p145 = pneg %p47
    $region27: #{tpu_custom_call.1} parent=1 // pred_check_branch
      %147 = sbr.rel (%p145) target = $region29
    $region28: #{tpu_custom_call.1} parent=1 // pred_region
      %v148 = vld [vmem:[#allocation7] sm:$0xff]
      %v149 = vld [vmem:[#allocation7 + $0x8] sm:$0xff]
      %v150 = vmul.f32 %v148, 0.125
      %v151 = vmul.f32 %v149, 0.125
      %v152 = vld [vmem:[%s2] sm:$0x1]
      %v153 = vmul.f32 %v152, 0.31622776
      %v155 = vperm.slane %v153, 0
      %v157 = vadd.f32 %v150, %v155
      %v158 = vadd.f32 %v151, %v155
      %159 = vst [vmem:[#allocation7] sm:$0xff] %v157
      %160 = vst [vmem:[#allocation7 + $0x8] sm:$0xff] %v158
    $region29: #{tpu_custom_call.1} parent=1 // pred_fallthru
      _
    // Predicated region
    $region30: #{tpu_custom_call.1} parent=1 // pred_check
      _
    $region31: #{tpu_custom_call.1} parent=1 // pred_check_branch
      %162 = sbr.rel (0) target = $region33
    $region32: #{tpu_custom_call.1} parent=1 // pred_region
      %164 = vsyncadd [#allocation4], 0
      %s165 = sshll.u32 [#allocation7], 4
      %s166 = int_to_ptr.vmem [resolvable:$true] %s165
      %s167 = sshll.u32 %s3, 4
      %s168 = int_to_ptr.hbm [resolvable:$true] %s167
      %173 = dma.vmem_to_hbm [thread:$0]  %s166, 256, %s168, [#allocation4], 128, 128, 8
    $region33: #{tpu_custom_call.1} parent=1 // pred_fallthru
      _
    // Predicated region
    $region34: #{tpu_custom_call.1} parent=1 // pred_check
      _
    $region35: #{tpu_custom_call.1} parent=1 // pred_check_branch
      %175 = sbr.rel (0) target = $region37
    $region36: #{tpu_custom_call.1} parent=1 // pred_region
      %177 = dma.done [#allocation4], 256
    $region37: #{tpu_custom_call.1} parent=1 // pred_fallthru
      _
    %178 = vsyncpa [#allocation3], 1
    %179 = vsyncpa [#allocation6], 1
    %180 = vsyncpa [#allocation4], 1

</llo_original>
